<compile_context>
chip_gen: v6e
topology: v6e:2x2x1
jax: 0.10.0
libtpu: 0.0.40
codegen_flags: <defaults>
</compile_context>

<pallas_src>
import functools

import jax
import jax.numpy as jnp
from jax.experimental import pallas as pl
from jax.experimental.pallas import tpu as pltpu


def _max_prob_kernel(x_ref, o_ref, run_ref, *, cls_id, num_cls, hw, tn,
                     needs_mask, approx, exp_dtype):
    """One grid step.

    x_ref   : (TB, 5, C, TN) input block; C = 5 + num_cls on sublanes, TN lanes.
    o_ref   : (1, 1, TB) output block, resident across the H*W grid axis.
    run_ref : (TB, 5, TN) f32 VMEM scratch holding the elementwise running max.
    """
    n = pl.program_id(1)

    @pl.when(n == 0)
    def _init():
        run_ref[...] = jnp.full(run_ref.shape, -jnp.inf, run_ref.dtype)

    # Slice the ref directly -- no materialized full-block upcast, no converts
    # on the 4 dead box channels.
    obj_logit = x_ref[:, :, 4, :].astype(jnp.float32)                # (TB,5,TN)
    cls_logits = x_ref[:, :, 5:5 + num_cls, :].astype(jnp.float32)   # (TB,5,NC,TN)

    # Numerically stable softmax over the class (sublane) axis; only class
    # `cls_id` is actually needed.
    m = jnp.max(cls_logits, axis=2, keepdims=True)                   # XLU reduce
    shifted = cls_logits - m
    if jnp.dtype(exp_dtype) != jnp.dtype(jnp.float32):
        e = jnp.exp(shifted.astype(exp_dtype))                       # bf16 EUP (v6e/v7x)
        denom = jnp.sum(e.astype(jnp.float32), axis=2)               # f32 accumulate
        e_cls = e[:, :, cls_id, :].astype(jnp.float32)
    else:
        e = jnp.exp(shifted)
        denom = jnp.sum(e, axis=2)
        e_cls = e[:, :, cls_id, :]

    # loss_target(obj, cls) = sigmoid(obj_logit) * softmax(cls)[cls_id]
    #                       = e_cls / (denom * (1 + exp(-obj_logit)))
    # -> one reciprocal (EUP slot) instead of two divides (VALU).
    scale = denom * (1.0 + jnp.exp(-obj_logit))                      # (TB,5,TN)
    conf = e_cls * pl.reciprocal(scale, approx=approx)               # (TB,5,TN)

    if needs_mask:
        # Trailing H*W block may extend past hw: mask padded lanes to -inf so
        # garbage (possibly NaN) never wins the max.
        lane = jax.lax.broadcasted_iota(jnp.int32, conf.shape, 2)
        conf = jnp.where(n * tn + lane < hw, conf, -jnp.inf)

    # Elementwise running max (VPU) only in the inner loop.
    run_ref[...] = jnp.maximum(run_ref[...], conf)

    @pl.when(n == pl.num_programs(1) - 1)
    def _finalize():
        best = jnp.max(run_ref[...], axis=(1, 2))                    # (TB,) XLU once
        o_ref[...] = best[None, None, :].astype(o_ref.dtype)


def _largest_divisor(n, cap):
    """Largest divisor of n that is <= cap (>= 1)."""
    cap = int(max(1, min(n, cap)))
    for d in range(cap, 0, -1):
        if n % d == 0:
            return d
    return 1


def max_prob_extractor(yolo_output, *, cls_id, num_cls, approx=False,
                       exp_dtype=jnp.float32,
                       block_budget_bytes=4 * 1024 * 1024):
    """YOLO max class-prob extraction.  yolo_output: (B, (5+num_cls)*5, H, W)."""
    if yolo_output.ndim == 3:
        yolo_output = yolo_output[None]
    batch, ch, h, w = yolo_output.shape
    C = 5 + num_cls
    assert ch == C * 5
    hw = h * w

    # Free (contiguous) reshape -- no transpose.  The softmax axis (C) becomes
    # the sublane axis of the kernel block, H*W the lane axis.
    x = yolo_output.reshape(batch, 5, C, hw)
    itemsize = jnp.dtype(x.dtype).itemsize

    # Lane (H*W) tile: multiple of 128 (or the whole extent when hw <= 128),
    # capped by the per-block VMEM budget.
    if hw <= 128:
        tn = hw
    else:
        lane_cap = max(128, (block_budget_bytes // (5 * C * itemsize)) // 128 * 128)
        tn = max(128, min((hw // 128) * 128, lane_cap))
    grid_n = pl.cdiv(hw, tn)

    # Batch tile: a divisor of batch, capped by the VMEM budget and (when
    # batch >= 2) by batch//2 so the "parallel" axis has >= 2 blocks
    # (v7x megacore + DMA/compute overlap).
    tb_cap = max(1, block_budget_bytes // (5 * C * tn * itemsize))
    if batch >= 2:
        tb_cap = min(tb_cap, batch // 2)
    tb = _largest_divisor(batch, tb_cap)
    grid_b = batch // tb

    # Never collapse to a single grid step if H*W can be split instead.
    if grid_b == 1 and grid_n == 1 and tn >= 256:
        tn = max(128, (tn // 2) // 128 * 128)
        grid_n = pl.cdiv(hw, tn)

    needs_mask = (grid_n * tn != hw)

    kernel = functools.partial(
        _max_prob_kernel, cls_id=cls_id, num_cls=num_cls, hw=hw, tn=tn,
        needs_mask=needs_mask, approx=approx, exp_dtype=exp_dtype)

    out = pl.pallas_call(
        kernel,
        out_shape=jax.ShapeDtypeStruct((grid_b, 1, tb), jnp.float32),
        grid=(grid_b, grid_n),
        in_specs=[pl.BlockSpec((tb, 5, C, tn), lambda b, n: (b, 0, 0, n))],
        out_specs=pl.BlockSpec((1, 1, tb), lambda b, n: (b, 0, 0)),
        scratch_shapes=[pltpu.VMEM((tb, 5, tn), jnp.float32)],
        compiler_params=pltpu.CompilerParams(
            dimension_semantics=("parallel", "arbitrary"),
            vmem_limit_bytes=32 * 1024 * 1024),
    )(x)
    return out.reshape(batch).astype(yolo_output.dtype)


def _reference(yolo_output, *, cls_id, num_cls):
    """Pure-JAX reference mirroring the PyTorch forward exactly."""
    batch, ch, h, w = yolo_output.shape
    C = 5 + num_cls
    x = yolo_output.reshape(batch, 5, C, h * w)
    x = jnp.transpose(x, (0, 2, 1, 3)).reshape(batch, C, 5 * h * w)
    obj = jax.nn.sigmoid(x[:, 4, :])
    normal_confs = jax.nn.softmax(x[:, 5:5 + num_cls, :], axis=1)
    confs_for_class = normal_confs[:, cls_id, :]
    confs_if_object = obj * confs_for_class        # config.loss_target(obj, cls)
    return jnp.max(confs_if_object, axis=1)


if __name__ == "__main__":
    # Small shapes consistent with the module: num_cls=3 -> C=8, channels=40.
    batch, num_cls, h, w = 2, 3, 16, 16
    cls_id = 0
    channels = (5 + num_cls) * 5                   # 40

    key = jax.random.PRNGKey(0)
    k0, k1 = jax.random.split(key)
    yolo_output = jax.random.normal(k0, (batch, channels, h, w), dtype=jnp.float32)
    ref = _reference(yolo_output, cls_id=cls_id, num_cls=num_cls)

    # 1) Default (exact reciprocal, f32 exp): tight numerical check.
    out_exact = jax.block_until_ready(
        max_prob_extractor(yolo_output, cls_id=cls_id, num_cls=num_cls))
    assert out_exact.shape == (batch,)
    assert jnp.allclose(out_exact, ref, atol=1e-5, rtol=1e-5), (out_exact, ref)

    # 2) Fast path (approx EUP reciprocal + bf16 exp): loose check.
    out_fast = jax.block_until_ready(
        max_prob_extractor(yolo_output, cls_id=cls_id, num_cls=num_cls,
                           approx=True, exp_dtype=jnp.bfloat16))
    assert jnp.allclose(out_fast, ref, atol=3e-2, rtol=3e-2), (out_fast, ref)

    # 3) Force the H*W-tiled accumulator path (tiny VMEM budget -> tn=128,
    #    grid=(2, 2)) and check it exactly as well.
    out_tiled = jax.block_until_ready(
        max_prob_extractor(yolo_output, cls_id=cls_id, num_cls=num_cls,
                           block_budget_bytes=20480))
    assert jnp.allclose(out_tiled, ref, atol=1e-5, rtol=1e-5), (out_tiled, ref)

    # 4) Ragged spatial extent (h*w = 169): exercises the cdiv grid + lane
    #    masking of the trailing partial H*W block.
    h2, w2 = 13, 13
    yolo_ragged = jax.random.normal(k1, (batch, channels, h2, w2), dtype=jnp.float32)
    ref_ragged = _reference(yolo_ragged, cls_id=cls_id, num_cls=num_cls)
    out_ragged = jax.block_until_ready(
        max_prob_extractor(yolo_ragged, cls_id=cls_id, num_cls=num_cls))
    assert jnp.allclose(out_ragged, ref_ragged, atol=1e-5, rtol=1e-5), (
        out_ragged, ref_ragged)

    print("KERNEL_OK")
</pallas_src>

<mosaic_0001>
module attributes {stable_mosaic.version = 11 : i64} {
  func.func @_max_prob_kernel(%arg0: i32, %arg1: i32, %arg2: memref<1x5x8x256xf32, #tpu.memory_space<vmem>>, %arg3: memref<1x1x1xf32, #tpu.memory_space<vmem>>, %arg4: memref<1x5x256xf32, #tpu.memory_space<vmem>>) attributes {dimension_semantics = [#tpu.dimension_semantics<parallel>, #tpu.dimension_semantics<arbitrary>], iteration_bounds = array<i64: 2, 1>, scalar_prefetch = 0 : i64, scratch_operands = 1 : i64, tpu.core_type = #tpu.core_type<tc>, window_params = [{transform_indices = @transform_0, window_bounds = array<i64: 1, 5, 8, 256>}, {transform_indices = @transform_1, window_bounds = array<i64: 1, 1, 1>}]} {
    %c0_i32 = arith.constant 0 : i32
    %0 = arith.cmpi eq, %arg1, %c0_i32 : i32
    %1 = arith.extui %0 : i1 to i32
    %c0_i32_0 = arith.constant 0 : i32
    %2 = arith.cmpi ne, %1, %c0_i32_0 : i32
    scf.if %2 {
      %cst_17 = arith.constant 0xFF800000 : f32
      %28 = vector.broadcast %cst_17 : f32 to vector<1x5x256xf32>
      %c0_18 = arith.constant 0 : index
      %c0_19 = arith.constant 0 : index
      %c0_20 = arith.constant 0 : index
      %29 = vector.load %arg4[%c0_18, %c0_19, %c0_20] : memref<1x5x256xf32, #tpu.memory_space<vmem>>, vector<1x5x256xf32>
      tpu.vector_store %arg4[%c0_18, %c0_19, %c0_20], %28 {strides = array<i32>} : memref<1x5x256xf32, #tpu.memory_space<vmem>>, vector<1x5x256xf32>,
    } else {
    }
    %c0 = arith.constant 0 : index
    %c0_1 = arith.constant 0 : index
    %c4 = arith.constant 4 : index
    %c0_2 = arith.constant 0 : index
    %3 = vector.load %arg2[%c0, %c0_1, %c4, %c0_2] : memref<1x5x8x256xf32, #tpu.memory_space<vmem>>, vector<1x5x1x256xf32>
    %4 = vector.shape_cast %3 : vector<1x5x1x256xf32> to vector<1x5x256xf32>
    %c0_3 = arith.constant 0 : index
    %c0_4 = arith.constant 0 : index
    %c5 = arith.constant 5 : index
    %c0_5 = arith.constant 0 : index
    %5 = vector.load %arg2[%c0_3, %c0_4, %c5, %c0_5] : memref<1x5x8x256xf32, #tpu.memory_space<vmem>>, vector<1x5x3x256xf32>
    %cst = arith.constant dense<0xFF800000> : vector<1x5x256xf32>
    %6 = vector.multi_reduction <maximumf>, %5, %cst [2] : vector<1x5x3x256xf32> to vector<1x5x256xf32>
    %7 = vector.shape_cast %6 : vector<1x5x256xf32> to vector<1x5x1x256xf32>
    %8 = vector.broadcast %7 : vector<1x5x1x256xf32> to vector<1x5x3x256xf32>
    %9 = arith.subf %5, %8 : vector<1x5x3x256xf32>
    %10 = math.exp %9 : vector<1x5x3x256xf32>
    %cst_6 = arith.constant dense<0.000000e+00> : vector<1x5x256xf32>
    %11 = vector.multi_reduction <add>, %10, %cst_6 [2] : vector<1x5x3x256xf32> to vector<1x5x256xf32>
    %12 = vector.extract_strided_slice %10 {offsets = [0, 0, 0, 0], sizes = [1, 5, 1, 256], strides = [1, 1, 1, 1]} : vector<1x5x3x256xf32> to vector<1x5x1x256xf32>
    %13 = vector.shape_cast %12 : vector<1x5x1x256xf32> to vector<1x5x256xf32>
    %cst_7 = arith.constant 0.000000e+00 : f32
    %14 = vector.broadcast %cst_7 : f32 to vector<1x5x256xf32>
    %15 = arith.subf %14, %4 : vector<1x5x256xf32>
    %16 = math.exp %15 : vector<1x5x256xf32>
    %cst_8 = arith.constant 1.000000e+00 : f32
    %17 = vector.broadcast %cst_8 : f32 to vector<1x5x256xf32>
    %18 = arith.addf %17, %16 : vector<1x5x256xf32>
    %19 = arith.mulf %11, %18 : vector<1x5x256xf32>
    %20 = tpu.reciprocal %19 : vector<1x5x256xf32> -> vector<1x5x256xf32>
    %21 = arith.mulf %13, %20 : vector<1x5x256xf32>
    %c0_9 = arith.constant 0 : index
    %c0_10 = arith.constant 0 : index
    %c0_11 = arith.constant 0 : index
    %22 = vector.load %arg4[%c0_9, %c0_10, %c0_11] : memref<1x5x256xf32, #tpu.memory_space<vmem>>, vector<1x5x256xf32>
    %23 = arith.maximumf %22, %21 : vector<1x5x256xf32>
    %c0_12 = arith.constant 0 : index
    %c0_13 = arith.constant 0 : index
    %c0_14 = arith.constant 0 : index
    %24 = vector.load %arg4[%c0_12, %c0_13, %c0_14] : memref<1x5x256xf32, #tpu.memory_space<vmem>>, vector<1x5x256xf32>
    tpu.vector_store %arg4[%c0_12, %c0_13, %c0_14], %23 {strides = array<i32>} : memref<1x5x256xf32, #tpu.memory_space<vmem>>, vector<1x5x256xf32>,
    %c0_i32_15 = arith.constant 0 : i32
    %25 = arith.cmpi eq, %arg1, %c0_i32_15 : i32
    %26 = arith.extui %25 : i1 to i32
    %c0_i32_16 = arith.constant 0 : i32
    %27 = arith.cmpi ne, %26, %c0_i32_16 : i32
    scf.if %27 {
      %c0_17 = arith.constant 0 : index
      %c0_18 = arith.constant 0 : index
      %c0_19 = arith.constant 0 : index
      %28 = vector.load %arg4[%c0_17, %c0_18, %c0_19] : memref<1x5x256xf32, #tpu.memory_space<vmem>>, vector<1x5x256xf32>
      %cst_20 = arith.constant dense<0xFF800000> : vector<1xf32>
      %29 = vector.multi_reduction <maximumf>, %28, %cst_20 [1, 2] : vector<1x5x256xf32> to vector<1xf32>
      %30 = vector.shape_cast %29 : vector<1xf32> to vector<1x1x1xf32>
      %c0_21 = arith.constant 0 : index
      %c0_22 = arith.constant 0 : index
      %c0_23 = arith.constant 0 : index
      %31 = vector.load %arg3[%c0_21, %c0_22, %c0_23] : memref<1x1x1xf32, #tpu.memory_space<vmem>>, vector<1x1x1xf32>
      tpu.vector_store %arg3[%c0_21, %c0_22, %c0_23], %30 {strides = array<i32>} : memref<1x1x1xf32, #tpu.memory_space<vmem>>, vector<1x1x1xf32>,
    } else {
    }
    return
  }
  func.func @transform_0(%arg0: i32, %arg1: i32) -> (i32, i32, i32, i32) {
    %c0_i32 = arith.constant 0 : i32
    %c0_i32_0 = arith.constant 0 : i32
    %c0_i32_1 = arith.constant 0 : i32
    return %arg0, %c0_i32, %c0_i32_0, %arg1 : i32, i32, i32, i32
  }
  func.func @transform_1(%arg0: i32, %arg1: i32) -> (i32, i32, i32) {
    %c0_i32 = arith.constant 0 : i32
    %c0_i32_0 = arith.constant 0 : i32
    %c0_i32_1 = arith.constant 0 : i32
    return %arg0, %c0_i32, %c0_i32_0 : i32, i32, i32
  }
}

</mosaic_0001>

<llo_original>
// kernel: tpu_custom_call.1
$region0: #{tpu_custom_call.1}
  #allocation0 [shape = 'u32[]', space=smem, size = 0x4, offset = 0x4, fixed_abs, tag = 'smem constant byte address 0x4 - core index']
  #allocation1 [shape = 'u32[144,128]{1,0:T(1,128)}', space=vmem, size = 0x12000, scoped, tag = 'internal scratch']
  #allocation2 [shape = 'f32[1,5,256]{2,1,0:T(8,128)}', space=vmem, size = 0x2000, scoped, tag = 'scratch operand']
  %s0 = inlined_call_operand.hbm [shape: f32[2,5,8,256], index: 0, kind: input, shape index: {}]
  %s1 = inlined_call_operand.vmem [shape: f32[2,1,1], index: 1, kind: output, shape index: {}]
  %s2 = sld [smem:[#allocation0]]
  $region49: #{tpu_custom_call.1} parent=0
    _
  %s4 = ssub.s32 1, %s2
  %s5 = scalar_select 0, %s4, %s2
  $region1: #{tpu_custom_call.1} parent=0
    #allocation3 [shape = 'u8[81920]{0}', space=vmem, size = 0x14000, scoped, tag = 'input window, operand 0']
    #allocation4 [shape = 's32[2]{0}', space=sflag, size = 0x8, scoped, tag = 'scoped memory for tpu_custom_call.1']
    %6 = vsyncpa [#allocation4], 0
    %s7 = scalar_lea.sflag [#allocation4], 1
    %8 = vsyncpa %s7, 0
    loop: start=0, step=1, limit=4
    $region2: #{tpu_custom_call.1} parent=1 // loop_pre_header
      _
    $region3: #{tpu_custom_call.1} parent=1 // loop_header
      %s10 = sphi 0, %s14
      %p11 = scmp.ge.s32.totalorder %s10, 4
      %s17 = sphi 0, %s29
      %s18 = sphi 0, %s25
      %s19 = sphi 0, %s17
      %s20 = sphi 0, %s18
      %s21 = sphi 0, %s19
      %s22 = sphi 0, %s20
      %s34 = sphi 0, %s36
      %s37 = sphi 0, %s34
      %s38 = sphi 0, %s37
      %s54 = sphi 0, %s38
      %s60 = sphi 0, %s62
      %s63 = sphi 0, %s60
      %s64 = sphi 0, %s63
      %s80 = sphi 0, %s64
    $region4: #{tpu_custom_call.1} parent=1 // loop_header_branch
      %13 = sbr.rel (%p11) target = $region8
    $region5: #{tpu_custom_call.1} parent=1 // loop_body
      %s15 = ssub.s32 %s10, 1
      %s16 = ssub.s32 %s10, 2
      %s23 = sadd.s32 1, %s18
      %p24 = scmp.ge.s32.totalorder %s23, 1
      %s25 = scalar_select %p24, 0, %s23
      %s26 = sadd.s32 1, %s17
      %s27 = scalar_select %p24, %s26, %s17
      %p28 = scmp.ge.s32.totalorder %s27, 2
      %s29 = scalar_select %p28, 0, %s27
      %s30 = ssub.s32 %s17, %s29
      %s31 = ssub.s32 %s18, %s25
      %s32 = sor.u32 %s30, %s31
      %p33 = scmp.eq.s32.totalorder %s32, 0
      %s35 = sadd.s32 %s34, 1
      %s36 = scalar_select %p33, %s34, %s35
      %p39 = pneg %p33
      %p40 = scmp.eq.s32.totalorder %s10, 1
      %p41 = por %p39, %p40
      %p42 = scmp.ne.s32.totalorder %s34, %s37
      %p43 = scmp.eq.s32.totalorder %s10, 0
      %p44 = por %p42, %p43
      %p45 = scmp.ne.s32.totalorder %s34, %s37
      %p46 = scmp.eq.s32.totalorder %s15, 1
      %p47 = por %p45, %p46
      %p48 = scmp.ne.s32.totalorder %s37, %s38
      %p49 = scmp.eq.s32.totalorder %s15, 0
      %p50 = por %p48, %p49
      %p51 = scmp.ne.s32.totalorder %s37, %s38
      %p52 = scmp.eq.s32.totalorder %s16, 1
      %p53 = por %p51, %p52
      %p55 = scmp.ne.s32.totalorder %s38, %s54
      %p56 = scmp.eq.s32.totalorder %s16, 0
      %p57 = por %p55, %p56
      %s58 = ssub.s32 %s17, %s29
      %p59 = scmp.eq.s32.totalorder %s58, 0
      %s61 = sadd.s32 %s60, 1
      %s62 = scalar_select %p59, %s60, %s61
      %p65 = pneg %p59
      %p66 = scmp.eq.s32.totalorder %s10, 1
      %p67 = por %p65, %p66
      %p68 = scmp.ne.s32.totalorder %s60, %s63
      %p69 = scmp.eq.s32.totalorder %s10, 0
      %p70 = por %p68, %p69
      %p71 = scmp.ne.s32.totalorder %s60, %s63
      %p72 = scmp.eq.s32.totalorder %s15, 1
      %p73 = por %p71, %p72
      %p74 = scmp.ne.s32.totalorder %s63, %s64
      %p75 = scmp.eq.s32.totalorder %s15, 0
      %p76 = por %p74, %p75
      %p77 = scmp.ne.s32.totalorder %s63, %s64
      %p78 = scmp.eq.s32.totalorder %s16, 1
      %p79 = por %p77, %p78
      %p81 = scmp.ne.s32.totalorder %s64, %s80
      %p82 = scmp.eq.s32.totalorder %s16, 0
      %p83 = por %p81, %p82
      %p84 = scmp.le.s32.totalorder 1, %s10
      %p85 = scmp.lt.s32.totalorder %s10, 3
      %p86 = pnand %p84, %p85
      %p87 = pneg %p86
      // Predicated region
      $region9: #{tpu_custom_call.1} parent=5 // pred_check
        _
      $region10: #{tpu_custom_call.1} parent=5 // pred_check_branch
        %89 = sbr.rel (%p86) target = $region12
      $region11: #{tpu_custom_call.1} parent=5 // pred_region
        %s90 = ssub.s32 %s10, 1
      $region12: #{tpu_custom_call.1} parent=5 // pred_fallthru
        _
      %p91 = scmp.lt.s32.totalorder %s10, 2
      // Predicated region
      $region13: #{tpu_custom_call.1} parent=5 // pred_check
        %p92 = pneg %p91
      $region14: #{tpu_custom_call.1} parent=5 // pred_check_branch
        %94 = sbr.rel (%p92) target = $region16
      $region15: #{tpu_custom_call.1} parent=5 // pred_region
        // Predicated region
        $region17: #{tpu_custom_call.1} parent=15 // pred_check
          %p95 = pneg %p44
        $region18: #{tpu_custom_call.1} parent=15 // pred_check_branch
          %97 = sbr.rel (%p95) target = $region20
        $region19: #{tpu_custom_call.1} parent=15 // pred_region
          %s98 = sand.u32 %s34, 1
          %s99 = scalar_lea.sflag [#allocation4], %s98
          %s100 = sand.u32 %s34, 1
          %s101 = smul.addr %s100, 80
          %s102 = scalar_lea.vmem [#allocation3], %s101
          %s103 = smul.u32 2, %s18
          %s105 = ssub.s32 1280, 1280
          %106 = vsyncadd %s99, %s105
          %s107 = smul.addr %s17, 10
          %s108 = sadd.s32 %s103, %s107
          %s109 = smul.addr %s108, 128
          %s110 = scalar_lea.hbm %s0, %s109
          %s111 = sshll.u32 %s102, 4
          %s112 = int_to_ptr.vmem [resolvable:$true] %s111
          %117 = dma.hbm_to_vmem [thread:$0]  %s110, 1280, %s112, %s99, 256, 256, 16
        $region20: #{tpu_custom_call.1} parent=15 // pred_fallthru
          _
      $region16: #{tpu_custom_call.1} parent=5 // pred_fallthru
        _
      %p118 = scmp.le.s32.totalorder 1, %s10
      %p119 = scmp.lt.s32.totalorder %s10, 3
      %p120 = pnand %p118, %p119
      %p121 = pneg %p120
      // Predicated region
      $region21: #{tpu_custom_call.1} parent=5 // pred_check
        _
      $region22: #{tpu_custom_call.1} parent=5 // pred_check_branch
        %123 = sbr.rel (%p120) target = $region24
      $region23: #{tpu_custom_call.1} parent=5 // pred_region
        %s124 = ssub.s32 %s10, 1
        %s125 = sand.u32 %s37, 1
        %s126 = scalar_lea.sflag [#allocation4], %s125
        %s127 = sand.u32 %s37, 1
        %s128 = smul.addr %s127, 80
        %s129 = scalar_lea.vmem [#allocation3], %s128
        // Predicated region
        $region25: #{tpu_custom_call.1} parent=23 // pred_check
          %p130 = pneg %p50
        $region26: #{tpu_custom_call.1} parent=23 // pred_check_branch
          %132 = sbr.rel (%p130) target = $region28
        $region27: #{tpu_custom_call.1} parent=23 // pred_region
          %133 = dma.done %s126, 1280
        $region28: #{tpu_custom_call.1} parent=23 // pred_fallthru
          _
        %s134 = sand.u32 %s37, 1
        %s135 = scalar_lea.sflag [#allocation4], %s134
        %s136 = sand.u32 %s37, 1
        %s137 = smul.addr %s136, 80
        %s138 = scalar_lea.vmem [#allocation3], %s137
        %p139 = pneg %p50
        %p140 = pneg %p47
        %p141 = pneg %p76
        %p142 = pneg %p73
        %p143 = scmp.lt.s32.totalorder %s19, 1
        %s144 = scalar_select %p143, %s19, 1
        %s145 = scalar_lea.vmem %s1, %s144
        %s146 = smul.u32 2, %s20
        %p147 = scmp.lt.s32.totalorder %s19, 1
        %s148 = scalar_select %p147, %s19, 1
        %s149 = scalar_lea.vmem %s1, %s148
        %p150 = scmp.eq.s32.totalorder %s20, 0
        // Predicated region
        $region29: #{tpu_custom_call.1} parent=23 // pred_check
          %p151 = pneg %p150
        $region30: #{tpu_custom_call.1} parent=23 // pred_check_branch
          %153 = sbr.rel (%p151) target = $region32
        $region31: #{tpu_custom_call.1} parent=23 // pred_region
          %154 = vst [vmem:[#allocation2] sm:$0x1f] -inf
          %155 = vst [vmem:[#allocation2 + $0x8] sm:$0x1f] -inf
        $region32: #{tpu_custom_call.1} parent=23 // pred_fallthru
          _
        %s156 = scalar_lea.vmem %s129, 4 [#allocation3]
        %v157 = vld [vmem:[%s156] ss:$8 sm:$0x3]
        %s158 = scalar_lea.vmem %s129, 20 [#allocation3]
        %v159 = vld [vmem:[%s158] ss:$8 sm:$0x3]
        %s160 = scalar_lea.vmem %s129, 36 [#allocation3]
        %v161 = vld [vmem:[%s160] ss:$8 sm:$0x3]
        %s162 = scalar_lea.vmem %s129, 52 [#allocation3]
        %v163 = vld [vmem:[%s162] ss:$8 sm:$0x3]
        %s164 = scalar_lea.vmem %s129, 68 [#allocation3]
        %v165 = vld [vmem:[%s164] ss:$8 sm:$0x3]
        %v166 = vld [vmem:[%s129] sm:$0xe0]
        %v167 = vld [vmem:[%s129 + $0x8] sm:$0xe0]
        %v168 = vld [vmem:[%s129 + $0x10] sm:$0xe0]
        %v169 = vld [vmem:[%s129 + $0x18] sm:$0xe0]
        %v170 = vld [vmem:[%s129 + $0x20] sm:$0xe0]
        %v171 = vld [vmem:[%s129 + $0x28] sm:$0xe0]
        %v172 = vld [vmem:[%s129 + $0x30] sm:$0xe0]
        %v173 = vld [vmem:[%s129 + $0x38] sm:$0xe0]
        %v174 = vld [vmem:[%s129 + $0x40] sm:$0xe0]
        %v175 = vld [vmem:[%s129 + $0x48] sm:$0xe0]
        %vm176 = vcmask 1047557
        %v177 = vsel %vm176, %v166, -inf
        %v178 = vrot.slane %v177, 4
        %v179 = vmax.f32 %v177, %v178
        %v180 = vrot.slane %v179, 2
        %v181 = vmax.f32 %v179, %v180
        %v182 = vrot.slane %v181, 1
        %v183 = vmax.f32 %v181, %v182
        %v184 = vsel %vm176, %v167, -inf
        %v185 = vrot.slane %v184, 4
        %v186 = vmax.f32 %v184, %v185
        %v187 = vrot.slane %v186, 2
        %v188 = vmax.f32 %v186, %v187
        %v189 = vrot.slane %v188, 1
        %v190 = vmax.f32 %v188, %v189
        %v191 = vsel %vm176, %v168, -inf
        %v192 = vrot.slane %v191, 4
        %v193 = vmax.f32 %v191, %v192
        %v194 = vrot.slane %v193, 2
        %v195 = vmax.f32 %v193, %v194
        %v196 = vrot.slane %v195, 1
        %v197 = vmax.f32 %v195, %v196
        %v198 = vsel %vm176, %v169, -inf
        %v199 = vrot.slane %v198, 4
        %v200 = vmax.f32 %v198, %v199
        %v201 = vrot.slane %v200, 2
        %v202 = vmax.f32 %v200, %v201
        %v203 = vrot.slane %v202, 1
        %v204 = vmax.f32 %v202, %v203
        %v205 = vsel %vm176, %v170, -inf
        %v206 = vrot.slane %v205, 4
        %v207 = vmax.f32 %v205, %v206
        %v208 = vrot.slane %v207, 2
        %v209 = vmax.f32 %v207, %v208
        %v210 = vrot.slane %v209, 1
        %v211 = vmax.f32 %v209, %v210
        %v212 = vsel %vm176, %v171, -inf
        %v213 = vrot.slane %v212, 4
        %v214 = vmax.f32 %v212, %v213
        %v215 = vrot.slane %v214, 2
        %v216 = vmax.f32 %v214, %v215
        %v217 = vrot.slane %v216, 1
        %v218 = vmax.f32 %v216, %v217
        %v219 = vsel %vm176, %v172, -inf
        %v220 = vrot.slane %v219, 4
        %v221 = vmax.f32 %v219, %v220
        %v222 = vrot.slane %v221, 2
        %v223 = vmax.f32 %v221, %v222
        %v224 = vrot.slane %v223, 1
        %v225 = vmax.f32 %v223, %v224
        %v226 = vsel %vm176, %v173, -inf
        %v227 = vrot.slane %v226, 4
        %v228 = vmax.f32 %v226, %v227
        %v229 = vrot.slane %v228, 2
        %v230 = vmax.f32 %v228, %v229
        %v231 = vrot.slane %v230, 1
        %v232 = vmax.f32 %v230, %v231
        %v233 = vsel %vm176, %v174, -inf
        %v234 = vrot.slane %v233, 4
        %v235 = vmax.f32 %v233, %v234
        %v236 = vrot.slane %v235, 2
        %v237 = vmax.f32 %v235, %v236
        %v238 = vrot.slane %v237, 1
        %v239 = vmax.f32 %v237, %v238
        %v240 = vsel %vm176, %v175, -inf
        %v241 = vrot.slane %v240, 4
        %v242 = vmax.f32 %v240, %v241
        %v243 = vrot.slane %v242, 2
        %v244 = vmax.f32 %v242, %v243
        %v245 = vrot.slane %v244, 1
        %v246 = vmax.f32 %v244, %v245
        %v247 = vsub.f32 %v166, %v183
        %v248 = vsub.f32 %v167, %v190
        %v249 = vsub.f32 %v168, %v197
        %v250 = vsub.f32 %v169, %v204
        %v251 = vsub.f32 %v170, %v211
        %v252 = vsub.f32 %v171, %v218
        %v253 = vsub.f32 %v172, %v225
        %v254 = vsub.f32 %v173, %v232
        %v255 = vsub.f32 %v174, %v239
        %v256 = vsub.f32 %v175, %v246
        %v257 = vmul.f32 %v247, 1.442695
        %v258 = vpow.pop %v257
        %v259 = vmul.f32 %v248, 1.442695
        %v260 = vpow.pop %v259
        %v261 = vmul.f32 %v249, 1.442695
        %v262 = vpow.pop %v261
        %v263 = vmul.f32 %v250, 1.442695
        %v264 = vpow.pop %v263
        %v265 = vmul.f32 %v251, 1.442695
        %v266 = vpow.pop %v265
        %v267 = vmul.f32 %v252, 1.442695
        %v268 = vpow.pop %v267
        %v269 = vmul.f32 %v253, 1.442695
        %v270 = vpow.pop %v269
        %v271 = vmul.f32 %v254, 1.442695
        %v272 = vpow.pop %v271
        %v273 = vmul.f32 %v255, 1.442695
        %v274 = vpow.pop %v273
        %v275 = vmul.f32 %v256, 1.442695
        %v276 = vpow.pop %v275
        %v287 = vrot.slane %v258, 5
        %v288 = vrot.slane %v260, 5
        %v289 = vrot.slane %v262, 5
        %v290 = vrot.slane %v264, 5
        %v291 = vrot.slane %v266, 5
        %v292 = vrot.slane %v268, 5
        %v293 = vrot.slane %v270, 5
        %v294 = vrot.slane %v272, 5
        %v295 = vrot.slane %v274, 5
        %v296 = vrot.slane %v276, 5
        %vm307 = vcmask 1042432
        %v308 = vsel %vm307, %v287, 0.0
        %v309 = vrot.slane %v308, 4
        %v310 = vadd.f32 %v308, %v309
        %v311 = vrot.slane %v310, 2
        %v312 = vadd.f32 %v310, %v311
        %v313 = vrot.slane %v312, 1
        %v314 = vadd.f32 %v312, %v313
        %v315 = vsel %vm307, %v288, 0.0
        %v316 = vrot.slane %v315, 4
        %v317 = vadd.f32 %v315, %v316
        %v318 = vrot.slane %v317, 2
        %v319 = vadd.f32 %v317, %v318
        %v320 = vrot.slane %v319, 1
        %v321 = vadd.f32 %v319, %v320
        %v322 = vsel %vm307, %v289, 0.0
        %v323 = vrot.slane %v322, 4
        %v324 = vadd.f32 %v322, %v323
        %v325 = vrot.slane %v324, 2
        %v326 = vadd.f32 %v324, %v325
        %v327 = vrot.slane %v326, 1
        %v328 = vadd.f32 %v326, %v327
        %v329 = vsel %vm307, %v290, 0.0
        %v330 = vrot.slane %v329, 4
        %v331 = vadd.f32 %v329, %v330
        %v332 = vrot.slane %v331, 2
        %v333 = vadd.f32 %v331, %v332
        %v334 = vrot.slane %v333, 1
        %v335 = vadd.f32 %v333, %v334
        %v336 = vsel %vm307, %v291, 0.0
        %v337 = vrot.slane %v336, 4
        %v338 = vadd.f32 %v336, %v337
        %v339 = vrot.slane %v338, 2
        %v340 = vadd.f32 %v338, %v339
        %v341 = vrot.slane %v340, 1
        %v342 = vadd.f32 %v340, %v341
        %v343 = vsel %vm307, %v292, 0.0
        %v344 = vrot.slane %v343, 4
        %v345 = vadd.f32 %v343, %v344
        %v346 = vrot.slane %v345, 2
        %v347 = vadd.f32 %v345, %v346
        %v348 = vrot.slane %v347, 1
        %v349 = vadd.f32 %v347, %v348
        %v350 = vsel %vm307, %v293, 0.0
        %v351 = vrot.slane %v350, 4
        %v352 = vadd.f32 %v350, %v351
        %v353 = vrot.slane %v352, 2
        %v354 = vadd.f32 %v352, %v353
        %v355 = vrot.slane %v354, 1
        %v356 = vadd.f32 %v354, %v355
        %v357 = vsel %vm307, %v294, 0.0
        %v358 = vrot.slane %v357, 4
        %v359 = vadd.f32 %v357, %v358
        %v360 = vrot.slane %v359, 2
        %v361 = vadd.f32 %v359, %v360
        %v362 = vrot.slane %v361, 1
        %v363 = vadd.f32 %v361, %v362
        %v364 = vsel %vm307, %v295, 0.0
        %v365 = vrot.slane %v364, 4
        %v366 = vadd.f32 %v364, %v365
        %v367 = vrot.slane %v366, 2
        %v368 = vadd.f32 %v366, %v367
        %v369 = vrot.slane %v368, 1
        %v370 = vadd.f32 %v368, %v369
        %v371 = vsel %vm307, %v296, 0.0
        %v372 = vrot.slane %v371, 4
        %v373 = vadd.f32 %v371, %v372
        %v374 = vrot.slane %v373, 2
        %v375 = vadd.f32 %v373, %v374
        %v376 = vrot.slane %v375, 1
        %v377 = vadd.f32 %v375, %v376
        %v378 = vsub.f32 0.0, %v157
        %v379 = vsub.f32 0.0, %v159
        %v380 = vsub.f32 0.0, %v161
        %v381 = vsub.f32 0.0, %v163
        %v382 = vsub.f32 0.0, %v165
        %v383 = vmul.f32 %v378, 1.442695
        %v384 = vpow.pop %v383
        %v385 = vmul.f32 %v379, 1.442695
        %v386 = vpow.pop %v385
        %v387 = vmul.f32 %v380, 1.442695
        %v388 = vpow.pop %v387
        %v389 = vmul.f32 %v381, 1.442695
        %v390 = vpow.pop %v389
        %v391 = vmul.f32 %v382, 1.442695
        %v392 = vpow.pop %v391
        %v393 = vadd.f32 %v384, 1.0
        %v394 = vadd.f32 %v386, 1.0
        %v395 = vadd.f32 %v388, 1.0
        %v396 = vadd.f32 %v390, 1.0
        %v397 = vadd.f32 %v392, 1.0
        %v403 = vlaneseq
        %v404 = vshrl.u32 %v403, 7
        %v405 = vsub.s32 0, %v404
        %v406 = vrot.slane %v393, %v405
        %v407 = vlaneseq
        %v408 = vshrl.u32 %v407, 7
        %v409 = vsub.s32 1, %v408
        %v410 = vrot.slane %v393, %v409
        %v411 = vlaneseq
        %v412 = vshrl.u32 %v411, 7
        %v413 = vsub.s32 0, %v412
        %v414 = vrot.slane %v394, %v413
        %v415 = vlaneseq
        %v416 = vshrl.u32 %v415, 7
        %v417 = vsub.s32 1, %v416
        %v418 = vrot.slane %v394, %v417
        %v419 = vlaneseq
        %v420 = vshrl.u32 %v419, 7
        %v421 = vsub.s32 0, %v420
        %v422 = vrot.slane %v395, %v421
        %v423 = vlaneseq
        %v424 = vshrl.u32 %v423, 7
        %v425 = vsub.s32 1, %v424
        %v426 = vrot.slane %v395, %v425
        %v427 = vlaneseq
        %v428 = vshrl.u32 %v427, 7
        %v429 = vsub.s32 0, %v428
        %v430 = vrot.slane %v396, %v429
        %v431 = vlaneseq
        %v432 = vshrl.u32 %v431, 7
        %v433 = vsub.s32 1, %v432
        %v434 = vrot.slane %v396, %v433
        %v435 = vlaneseq
        %v436 = vshrl.u32 %v435, 7
        %v437 = vsub.s32 0, %v436
        %v438 = vrot.slane %v397, %v437
        %v439 = vlaneseq
        %v440 = vshrl.u32 %v439, 7
        %v441 = vsub.s32 1, %v440
        %v442 = vrot.slane %v397, %v441
        %v453 = vmul.f32 %v314, %v406
        %v454 = vmul.f32 %v321, %v410
        %v455 = vmul.f32 %v328, %v414
        %v456 = vmul.f32 %v335, %v418
        %v457 = vmul.f32 %v342, %v422
        %v458 = vmul.f32 %v349, %v426
        %v459 = vmul.f32 %v356, %v430
        %v460 = vmul.f32 %v363, %v434
        %v461 = vmul.f32 %v370, %v438
        %v462 = vmul.f32 %v377, %v442
        %v463 = vrcp.pop %v453
        %v464 = vrcp.pop %v454
        %v465 = vrcp.pop %v455
        %v466 = vrcp.pop %v456
        %v467 = vrcp.pop %v457
        %v468 = vrcp.pop %v458
        %v469 = vrcp.pop %v459
        %v470 = vrcp.pop %v460
        %v471 = vrcp.pop %v461
        %v472 = vrcp.pop %v462
        %v483 = vrot.slane %v463, 3
        %v484 = vrot.slane %v464, 3
        %v485 = vrot.slane %v465, 3
        %v486 = vrot.slane %v466, 3
        %v487 = vrot.slane %v467, 3
        %v488 = vrot.slane %v468, 3
        %v489 = vrot.slane %v469, 3
        %v490 = vrot.slane %v470, 3
        %v491 = vrot.slane %v471, 3
        %v492 = vrot.slane %v472, 3
        %v503 = vmul.f32 %v258, %v483
        %v504 = vmul.f32 %v260, %v484
        %v505 = vmul.f32 %v262, %v485
        %v506 = vmul.f32 %v264, %v486
        %v507 = vmul.f32 %v266, %v487
        %v508 = vmul.f32 %v268, %v488
        %v509 = vmul.f32 %v270, %v489
        %v510 = vmul.f32 %v272, %v490
        %v511 = vmul.f32 %v274, %v491
        %v512 = vmul.f32 %v276, %v492
        %v513 = vld [vmem:[#allocation2] sm:$0x1f]
        %v514 = vld [vmem:[#allocation2 + $0x8] sm:$0x1f]
        %v525 = vrot.slane %v503, 5
        %v526 = vrot.slane %v505, 4
        %vm527 = vcmask 1041409
        %v528 = vsel %vm527, %v526, %v525
        %v529 = vrot.slane %v507, 3
        %vm530 = vcmask 1042434
        %v531 = vsel %vm530, %v529, %v528
        %v532 = vrot.slane %v509, 2
        %vm533 = vcmask 1043459
        %v534 = vsel %vm533, %v532, %v531
        %v535 = vrot.slane %v511, 1
        %vm536 = vcmask 1044484
        %v537 = vsel %vm536, %v535, %v534
        %v538 = vrot.slane %v504, 5
        %v539 = vrot.slane %v506, 4
        %v540 = vsel %vm527, %v539, %v538
        %v541 = vrot.slane %v508, 3
        %v542 = vsel %vm530, %v541, %v540
        %v543 = vrot.slane %v510, 2
        %v544 = vsel %vm533, %v543, %v542
        %v545 = vrot.slane %v512, 1
        %v546 = vsel %vm536, %v545, %v544
        %v549 = vmax.f32 %v513, %v537
        %v550 = vmax.f32 %v514, %v546
        %551 = vst [vmem:[#allocation2] sm:$0x1f] %v549
        %552 = vst [vmem:[#allocation2 + $0x8] sm:$0x1f] %v550
        // Predicated region
        $region33: #{tpu_custom_call.1} parent=23 // pred_check
          %p553 = pneg %p150
        $region34: #{tpu_custom_call.1} parent=23 // pred_check_branch
          %555 = sbr.rel (%p553) target = $region36
        $region35: #{tpu_custom_call.1} parent=23 // pred_region
          %v556 = vld [vmem:[#allocation2] sm:$0x1f]
          %v557 = vld [vmem:[#allocation2 + $0x8] sm:$0x1f]
          %vm558 = vcmask 1044480
          %v559 = vsel %vm558, %v556, -inf
          %v560 = vsel %vm558, %v557, -inf
          %v561 = vmax.f32 %v559, %v560
          %562 = vmax.xlane.f32.xlu0 %v561
          %v563 = vpop.xlane.xlu0 %562
          %v564 = vrot.slane %v563, 4
          %v565 = vmax.f32 %v563, %v564
          %v566 = vrot.slane %v565, 2
          %v567 = vmax.f32 %v565, %v566
          %v568 = vrot.slane %v567, 1
          %v569 = vmax.f32 %v567, %v568
          %vm570 = vcmask 0
          %571 = vst.msk [vmem:[%s149] sm:$0x1] %vm570, %v569
        $region36: #{tpu_custom_call.1} parent=23 // pred_fallthru
          _
        %p572 = scmp.lt.s32.totalorder %s19, 1
        %s573 = scalar_select %p572, %s19, 1
        %s574 = scalar_lea.vmem %s1, %s573
        // Predicated region
        $region37: #{tpu_custom_call.1} parent=23 // pred_check
          %p575 = pneg %p73
        $region38: #{tpu_custom_call.1} parent=23 // pred_check_branch
          %577 = sbr.rel (%p575) target = $region40
        $region39: #{tpu_custom_call.1} parent=23 // pred_region
          _
        $region40: #{tpu_custom_call.1} parent=23 // pred_fallthru
          _
      $region24: #{tpu_custom_call.1} parent=5 // pred_fallthru
        _
      %p578 = scmp.le.s32.totalorder 2, %s10
      // Predicated region
      $region41: #{tpu_custom_call.1} parent=5 // pred_check
        %p579 = pneg %p578
      $region42: #{tpu_custom_call.1} parent=5 // pred_check_branch
        %581 = sbr.rel (%p579) target = $region44
      $region43: #{tpu_custom_call.1} parent=5 // pred_region
        %s582 = ssub.s32 %s10, 2
        // Predicated region
        $region45: #{tpu_custom_call.1} parent=43 // pred_check
          %p583 = pneg %p79
        $region46: #{tpu_custom_call.1} parent=43 // pred_check_branch
          %585 = sbr.rel (%p583) target = $region48
        $region47: #{tpu_custom_call.1} parent=43 // pred_region
          %p586 = scmp.lt.s32.totalorder %s21, 1
          %s587 = scalar_select %p586, %s21, 1
          %s588 = scalar_lea.vmem %s1, %s587
        $region48: #{tpu_custom_call.1} parent=43 // pred_fallthru
          _
      $region44: #{tpu_custom_call.1} parent=5 // pred_fallthru
        _
    $region6: #{tpu_custom_call.1} parent=1 // loop_footer
      %s14 = sadd.s32 1, %s10
    $region7: #{tpu_custom_call.1} parent=1 // loop_footer_branch
      %9 = sbr.rel target = $region3
    $region8: #{tpu_custom_call.1} parent=1 // loop_exit
      _
    %589 = vsyncpa [#allocation4], 1
    %s590 = scalar_lea.sflag [#allocation4], 1
    %591 = vsyncpa %s590, 1

</llo_original>
